<compile_context>
chip_gen: v5e
topology: v5e:2x2
jax: 0.10.0
libtpu: 0.0.40
codegen_flags: <defaults>
</compile_context>

<pallas_src>
import functools

import jax
import jax.numpy as jnp
from jax import lax
from jax.experimental import pallas as pl
from jax.experimental.pallas import tpu as pltpu


def _attn_kernel(qvk_ref, o_ref, *, scale, n_heads):
    # qvk_ref block: (1, N, 3, E)   -- the full q/k/v slab for this batch.
    # o_ref   block: (1, H, N, D)   -- row-major layout matching the module's
    #                                  (B, H, N, D).reshape(B, N, E) flatten.
    _, n, _, e = qvk_ref.shape
    d = e // n_heads

    x = qvk_ref[0]                       # (N, 3, E) values in VMEM
    q_all = x[:, 0, :] * scale           # fold scale into q (N*E mults)
    k_all = x[:, 1, :]
    v_all = x[:, 2, :]

    for h in range(n_heads):             # static unroll over heads
        sl = slice(h * d, (h + 1) * d)
        q = q_all[:, sl]                 # (N, D)
        k = k_all[:, sl]
        v = v_all[:, sl]

        # scores = (q * scale) @ k^T  (contract head_dim, no explicit transpose)
        s = lax.dot_general(q, k, (((1,), (1,)), ((), ())),
                            preferred_element_type=jnp.float32)      # (N, N)

        # softmax(dim=-1) with deferred normalization
        m = jnp.max(s, axis=-1, keepdims=True)
        p = jnp.exp(s - m)                                           # unnormalized
        l = jnp.sum(p, axis=-1, keepdims=True)
        o = jnp.dot(p.astype(v.dtype), v,
                    preferred_element_type=jnp.float32)              # (N, D)
        o = o * pl.reciprocal(l)         # exact reciprocal keeps tolerance tight

        o_ref[0, h] = o.astype(o_ref.dtype)


def _proj_kernel(x_ref, w_ref, o_ref, acc_ref):
    # y = x @ W^T : contract last dim of x (tm, tk) with last dim of w (tn, tk).
    @pl.when(pl.program_id(2) == 0)
    def _():
        acc_ref[...] = jnp.zeros_like(acc_ref)

    acc_ref[...] += lax.dot_general(x_ref[...], w_ref[...],
                                    (((1,), (1,)), ((), ())),
                                    preferred_element_type=jnp.float32)

    @pl.when(pl.program_id(2) == pl.num_programs(2) - 1)
    def _():
        o_ref[...] = acc_ref[...].astype(o_ref.dtype)


def _tile(dim, *candidates):
    # Largest candidate that evenly divides `dim`; fall back to the full extent
    # (toy dims stay un-tiled, real 128/256-multiple dims get proper tiles).
    for t in candidates:
        if dim >= t and dim % t == 0:
            return t
    return dim


def attention_forward(qvk, w_proj, n_heads):
    """qvk: (B, N, 3, E) float32; w_proj: (E, E) PyTorch nn.Linear weight (out, in)."""
    b, n, three, e = qvk.shape
    assert three == 3 and e % n_heads == 0
    d = e // n_heads
    scale = n_heads ** (-0.5)   # NB: module scales by n_heads^-0.5, not head_dim^-0.5

    # ---- attention: one grid step per batch, all heads in-kernel -------------
    attn_cost = pl.CostEstimate(
        flops=4 * b * n_heads * n * n * d,            # qk^T + pv
        transcendentals=b * n_heads * n * n,          # exp
        bytes_accessed=(b * n * 3 * e + b * n * e) * 4)

    attn = pl.pallas_call(
        functools.partial(_attn_kernel, scale=scale, n_heads=n_heads),
        out_shape=jax.ShapeDtypeStruct((b, n_heads, n, d), qvk.dtype),
        grid=(b,),
        in_specs=[pl.BlockSpec((1, n, 3, e), lambda i: (i, 0, 0, 0))],
        out_specs=pl.BlockSpec((1, n_heads, n, d), lambda i: (i, 0, 0, 0)),
        compiler_params=pltpu.CompilerParams(
            dimension_semantics=("parallel",)),
        cost_estimate=attn_cost,
    )(qvk)

    # PyTorch-exact flatten: (B, H, N, D) -> (B*N, E) row-major (head-interleaved,
    # exactly `attention.reshape(b, n, -1)` in the module).  Contiguous reshape =>
    # free under jit (no HBM pass).
    x2d = attn.reshape(b * n, e)

    # ---- output projection: tiled matmul with K-reduction grid axis ----------
    m = b * n
    tm = _tile(m, 256, 128)
    tn = _tile(e, 256, 128)
    tk = _tile(e, 512, 256, 128)

    proj_cost = pl.CostEstimate(
        flops=2 * m * e * e,
        transcendentals=0,
        bytes_accessed=(m * e + e * e + m * e) * 4)

    out = pl.pallas_call(
        _proj_kernel,
        out_shape=jax.ShapeDtypeStruct((m, e), qvk.dtype),
        grid=(m // tm, e // tn, e // tk),
        in_specs=[
            pl.BlockSpec((tm, tk), lambda i, j, k: (i, k)),   # x tile
            pl.BlockSpec((tn, tk), lambda i, j, k: (j, k)),   # W tile (out, in)
        ],
        out_specs=pl.BlockSpec((tm, tn), lambda i, j, k: (i, j)),
        scratch_shapes=[pltpu.VMEM((tm, tn), jnp.float32)],
        compiler_params=pltpu.CompilerParams(
            dimension_semantics=("parallel", "parallel", "arbitrary")),
        cost_estimate=proj_cost,
    )(x2d, w_proj)

    return out.reshape(b, n, e)


def _reference_forward(qvk, w_proj, n_heads):
    b, n, _, e = qvk.shape
    d = e // n_heads
    qkv = qvk.reshape(b, n, 3, n_heads, d).transpose(2, 0, 3, 1, 4)
    q, k, v = qkv[0], qkv[1], qkv[2]
    s = jnp.einsum('bhqd,bhkd->bhqk', q, k) * (n_heads ** (-0.5))
    p = jax.nn.softmax(s, axis=-1)
    o = jnp.einsum('bhqk,bhkd->bhqd', p, v)
    o = o.reshape(b, n, e)          # same head-interleaved reshape as the module
    return o @ w_proj.T


if __name__ == "__main__":
    B, N, E, H = 2, 8, 16, 4        # embed_dim=16, n_heads=4 (module defaults)
    key = jax.random.PRNGKey(0)
    k_in, k_w = jax.random.split(key)

    qvk = jax.random.normal(k_in, (B, N, 3, E), dtype=jnp.float32)
    # Deterministic nn.Linear(E, E, bias=False) weight, stored PyTorch-style (out, in).
    bound = 1.0 / (E ** 0.5)
    w_proj = jax.random.uniform(k_w, (E, E), minval=-bound, maxval=bound,
                                dtype=jnp.float32)

    fwd = jax.jit(attention_forward, static_argnums=2)
    out = fwd(qvk, w_proj, H)
    out = jax.block_until_ready(out)

    ref = _reference_forward(qvk, w_proj, H)
    assert out.shape == (B, N, E)
    assert jnp.allclose(out, ref, atol=1e-5, rtol=1e-5), "mismatch vs reference"

    print("KERNEL_OK")
</pallas_src>

<mosaic_0001>
module attributes {stable_mosaic.version = 11 : i64} {
  func.func @_proj_kernel(%arg0: i32, %arg1: i32, %arg2: i32, %arg3: memref<16x16xf32, #tpu.memory_space<vmem>>, %arg4: memref<16x16xf32, #tpu.memory_space<vmem>>, %arg5: memref<16x16xf32, #tpu.memory_space<vmem>>, %arg6: memref<16x16xf32, #tpu.memory_space<vmem>>) attributes {dimension_semantics = [#tpu.dimension_semantics<parallel>, #tpu.dimension_semantics<parallel>, #tpu.dimension_semantics<arbitrary>], iteration_bounds = array<i64: 1, 1, 1>, scalar_prefetch = 0 : i64, scratch_operands = 1 : i64, tpu.core_type = #tpu.core_type<tc>, window_params = [{transform_indices = @transform_0, window_bounds = array<i64: 16, 16>}, {transform_indices = @transform_1, window_bounds = array<i64: 16, 16>}, {transform_indices = @transform_2, window_bounds = array<i64: 16, 16>}]} {
    %c0_i32 = arith.constant 0 : i32
    %0 = arith.cmpi eq, %arg2, %c0_i32 : i32
    %1 = arith.extui %0 : i1 to i32
    %c0_i32_0 = arith.constant 0 : i32
    %2 = arith.cmpi ne, %1, %c0_i32_0 : i32
    scf.if %2 {
      %cst_10 = arith.constant 0.000000e+00 : f32
      %12 = vector.broadcast %cst_10 : f32 to vector<16x16xf32>
      %c0_11 = arith.constant 0 : index
      %c0_12 = arith.constant 0 : index
      %13 = vector.load %arg6[%c0_11, %c0_12] : memref<16x16xf32, #tpu.memory_space<vmem>>, vector<16x16xf32>
      tpu.vector_store %arg6[%c0_11, %c0_12], %12 {strides = array<i32>} : memref<16x16xf32, #tpu.memory_space<vmem>>, vector<16x16xf32>,
    } else {
    }
    %c0 = arith.constant 0 : index
    %c0_1 = arith.constant 0 : index
    %3 = vector.load %arg6[%c0, %c0_1] : memref<16x16xf32, #tpu.memory_space<vmem>>, vector<16x16xf32>
    %c0_2 = arith.constant 0 : index
    %c0_3 = arith.constant 0 : index
    %4 = vector.load %arg3[%c0_2, %c0_3] : memref<16x16xf32, #tpu.memory_space<vmem>>, vector<16x16xf32>
    %c0_4 = arith.constant 0 : index
    %c0_5 = arith.constant 0 : index
    %5 = vector.load %arg4[%c0_4, %c0_5] : memref<16x16xf32, #tpu.memory_space<vmem>>, vector<16x16xf32>
    %cst = arith.constant dense<0.000000e+00> : vector<16x16xf32>
    %6 = tpu.matmul %4, %5, %cst {dimension_numbers = #tpu.dot_dimension_numbers<[1], [1], [0], [0], [0, 0, 1, 0], [], []>} : vector<16x16xf32>, vector<16x16xf32>, vector<16x16xf32> -> vector<16x16xf32>
    %7 = arith.addf %3, %6 : vector<16x16xf32>
    %c0_6 = arith.constant 0 : index
    %c0_7 = arith.constant 0 : index
    %8 = vector.load %arg6[%c0_6, %c0_7] : memref<16x16xf32, #tpu.memory_space<vmem>>, vector<16x16xf32>
    tpu.vector_store %arg6[%c0_6, %c0_7], %7 {strides = array<i32>} : memref<16x16xf32, #tpu.memory_space<vmem>>, vector<16x16xf32>,
    %c0_i32_8 = arith.constant 0 : i32
    %9 = arith.cmpi eq, %arg2, %c0_i32_8 : i32
    %10 = arith.extui %9 : i1 to i32
    %c0_i32_9 = arith.constant 0 : i32
    %11 = arith.cmpi ne, %10, %c0_i32_9 : i32
    scf.if %11 {
      %c0_10 = arith.constant 0 : index
      %c0_11 = arith.constant 0 : index
      %12 = vector.load %arg6[%c0_10, %c0_11] : memref<16x16xf32, #tpu.memory_space<vmem>>, vector<16x16xf32>
      %c0_12 = arith.constant 0 : index
      %c0_13 = arith.constant 0 : index
      %13 = vector.load %arg5[%c0_12, %c0_13] : memref<16x16xf32, #tpu.memory_space<vmem>>, vector<16x16xf32>
      tpu.vector_store %arg5[%c0_12, %c0_13], %12 {strides = array<i32>} : memref<16x16xf32, #tpu.memory_space<vmem>>, vector<16x16xf32>,
    } else {
    }
    return
  }
  func.func @transform_0(%arg0: i32, %arg1: i32, %arg2: i32) -> (i32, i32) {
    %c0_i32 = arith.constant 0 : i32
    return %arg0, %arg2 : i32, i32
  }
  func.func @transform_1(%arg0: i32, %arg1: i32, %arg2: i32) -> (i32, i32) {
    %c0_i32 = arith.constant 0 : i32
    return %arg1, %arg2 : i32, i32
  }
  func.func @transform_2(%arg0: i32, %arg1: i32, %arg2: i32) -> (i32, i32) {
    %c0_i32 = arith.constant 0 : i32
    return %arg0, %arg1 : i32, i32
  }
}

module attributes {stable_mosaic.version = 11 : i64} {
  func.func @_attn_kernel(%arg0: i32, %arg1: memref<1x8x3x16xf32, #tpu.memory_space<vmem>>, %arg2: memref<1x4x8x4xf32, #tpu.memory_space<vmem>>) attributes {dimension_semantics = [#tpu.dimension_semantics<parallel>], iteration_bounds = array<i64: 2>, scalar_prefetch = 0 : i64, scratch_operands = 0 : i64, tpu.core_type = #tpu.core_type<tc>, window_params = [{transform_indices = @transform_0, window_bounds = array<i64: 1, 8, 3, 16>}, {transform_indices = @transform_1, window_bounds = array<i64: 1, 4, 8, 4>}]} {
    %c0 = arith.constant 0 : index
    %c0_0 = arith.constant 0 : index
    %c0_1 = arith.constant 0 : index
    %c0_2 = arith.constant 0 : index
    %0 = vector.load %arg1[%c0, %c0_0, %c0_1, %c0_2] : memref<1x8x3x16xf32, #tpu.memory_space<vmem>>, vector<1x8x3x16xf32>
    %1 = vector.shape_cast %0 : vector<1x8x3x16xf32> to vector<8x3x16xf32>
    %2 = vector.extract_strided_slice %1 {offsets = [0, 0, 0], sizes = [8, 1, 16], strides = [1, 1, 1]} : vector<8x3x16xf32> to vector<8x1x16xf32>
    %3 = vector.shape_cast %2 : vector<8x1x16xf32> to vector<8x16xf32>
    %cst = arith.constant 5.000000e-01 : f32
    %4 = vector.broadcast %cst : f32 to vector<8x16xf32>
    %5 = arith.mulf %3, %4 : vector<8x16xf32>
    %6 = vector.extract_strided_slice %1 {offsets = [0, 1, 0], sizes = [8, 1, 16], strides = [1, 1, 1]} : vector<8x3x16xf32> to vector<8x1x16xf32>
    %7 = vector.shape_cast %6 : vector<8x1x16xf32> to vector<8x16xf32>
    %8 = vector.extract_strided_slice %1 {offsets = [0, 2, 0], sizes = [8, 1, 16], strides = [1, 1, 1]} : vector<8x3x16xf32> to vector<8x1x16xf32>
    %9 = vector.shape_cast %8 : vector<8x1x16xf32> to vector<8x16xf32>
    %10 = vector.extract_strided_slice %5 {offsets = [0, 0], sizes = [8, 4], strides = [1, 1]} : vector<8x16xf32> to vector<8x4xf32>
    %11 = vector.extract_strided_slice %7 {offsets = [0, 0], sizes = [8, 4], strides = [1, 1]} : vector<8x16xf32> to vector<8x4xf32>
    %12 = vector.extract_strided_slice %9 {offsets = [0, 0], sizes = [8, 4], strides = [1, 1]} : vector<8x16xf32> to vector<8x4xf32>
    %cst_3 = arith.constant dense<0.000000e+00> : vector<8x8xf32>
    %13 = tpu.matmul %10, %11, %cst_3 {dimension_numbers = #tpu.dot_dimension_numbers<[1], [1], [0], [0], [0, 0, 1, 0], [], []>} : vector<8x4xf32>, vector<8x4xf32>, vector<8x8xf32> -> vector<8x8xf32>
    %cst_4 = arith.constant dense<0xFF800000> : vector<8xf32>
    %14 = vector.multi_reduction <maximumf>, %13, %cst_4 [1] : vector<8x8xf32> to vector<8xf32>
    %15 = vector.shape_cast %14 : vector<8xf32> to vector<8x1xf32>
    %16 = vector.broadcast %15 : vector<8x1xf32> to vector<8x8xf32>
    %17 = arith.subf %13, %16 : vector<8x8xf32>
    %18 = math.exp %17 : vector<8x8xf32>
    %cst_5 = arith.constant dense<0.000000e+00> : vector<8xf32>
    %19 = vector.multi_reduction <add>, %18, %cst_5 [1] : vector<8x8xf32> to vector<8xf32>
    %20 = vector.shape_cast %19 : vector<8xf32> to vector<8x1xf32>
    %cst_6 = arith.constant dense<0.000000e+00> : vector<8x4xf32>
    %21 = tpu.matmul %18, %12, %cst_6 {dimension_numbers = #tpu.dot_dimension_numbers<[1], [0], [0], [1], [0, 0, 1, 1], [], []>} : vector<8x8xf32>, vector<8x4xf32>, vector<8x4xf32> -> vector<8x4xf32>
    %22 = tpu.reciprocal %20 : vector<8x1xf32> -> vector<8x1xf32>
    %23 = vector.broadcast %22 : vector<8x1xf32> to vector<8x4xf32>
    %24 = arith.mulf %21, %23 : vector<8x4xf32>
    %c0_7 = arith.constant 0 : index
    %c0_8 = arith.constant 0 : index
    %c0_9 = arith.constant 0 : index
    %c0_10 = arith.constant 0 : index
    %25 = vector.load %arg2[%c0_7, %c0_8, %c0_9, %c0_10] : memref<1x4x8x4xf32, #tpu.memory_space<vmem>>, vector<1x1x8x4xf32>
    %26 = vector.shape_cast %25 : vector<1x1x8x4xf32> to vector<8x4xf32>
    %27 = vector.shape_cast %24 : vector<8x4xf32> to vector<1x1x8x4xf32>
    tpu.vector_store %arg2[%c0_7, %c0_8, %c0_9, %c0_10], %27 {strides = array<i32>} : memref<1x4x8x4xf32, #tpu.memory_space<vmem>>, vector<1x1x8x4xf32>,
    %28 = vector.extract_strided_slice %5 {offsets = [0, 4], sizes = [8, 4], strides = [1, 1]} : vector<8x16xf32> to vector<8x4xf32>
    %29 = vector.extract_strided_slice %7 {offsets = [0, 4], sizes = [8, 4], strides = [1, 1]} : vector<8x16xf32> to vector<8x4xf32>
    %30 = vector.extract_strided_slice %9 {offsets = [0, 4], sizes = [8, 4], strides = [1, 1]} : vector<8x16xf32> to vector<8x4xf32>
    %cst_11 = arith.constant dense<0.000000e+00> : vector<8x8xf32>
    %31 = tpu.matmul %28, %29, %cst_11 {dimension_numbers = #tpu.dot_dimension_numbers<[1], [1], [0], [0], [0, 0, 1, 0], [], []>} : vector<8x4xf32>, vector<8x4xf32>, vector<8x8xf32> -> vector<8x8xf32>
    %cst_12 = arith.constant dense<0xFF800000> : vector<8xf32>
    %32 = vector.multi_reduction <maximumf>, %31, %cst_12 [1] : vector<8x8xf32> to vector<8xf32>
    %33 = vector.shape_cast %32 : vector<8xf32> to vector<8x1xf32>
    %34 = vector.broadcast %33 : vector<8x1xf32> to vector<8x8xf32>
    %35 = arith.subf %31, %34 : vector<8x8xf32>
    %36 = math.exp %35 : vector<8x8xf32>
    %cst_13 = arith.constant dense<0.000000e+00> : vector<8xf32>
    %37 = vector.multi_reduction <add>, %36, %cst_13 [1] : vector<8x8xf32> to vector<8xf32>
    %38 = vector.shape_cast %37 : vector<8xf32> to vector<8x1xf32>
    %cst_14 = arith.constant dense<0.000000e+00> : vector<8x4xf32>
    %39 = tpu.matmul %36, %30, %cst_14 {dimension_numbers = #tpu.dot_dimension_numbers<[1], [0], [0], [1], [0, 0, 1, 1], [], []>} : vector<8x8xf32>, vector<8x4xf32>, vector<8x4xf32> -> vector<8x4xf32>
    %40 = tpu.reciprocal %38 : vector<8x1xf32> -> vector<8x1xf32>
    %41 = vector.broadcast %40 : vector<8x1xf32> to vector<8x4xf32>
    %42 = arith.mulf %39, %41 : vector<8x4xf32>
    %c0_15 = arith.constant 0 : index
    %c1 = arith.constant 1 : index
    %c0_16 = arith.constant 0 : index
    %c0_17 = arith.constant 0 : index
    %43 = vector.load %arg2[%c0_15, %c1, %c0_16, %c0_17] : memref<1x4x8x4xf32, #tpu.memory_space<vmem>>, vector<1x1x8x4xf32>
    %44 = vector.shape_cast %43 : vector<1x1x8x4xf32> to vector<8x4xf32>
    %45 = vector.shape_cast %42 : vector<8x4xf32> to vector<1x1x8x4xf32>
    tpu.vector_store %arg2[%c0_15, %c1, %c0_16, %c0_17], %45 {strides = array<i32>} : memref<1x4x8x4xf32, #tpu.memory_space<vmem>>, vector<1x1x8x4xf32>,
    %46 = vector.extract_strided_slice %5 {offsets = [0, 8], sizes = [8, 4], strides = [1, 1]} : vector<8x16xf32> to vector<8x4xf32>
    %47 = vector.extract_strided_slice %7 {offsets = [0, 8], sizes = [8, 4], strides = [1, 1]} : vector<8x16xf32> to vector<8x4xf32>
    %48 = vector.extract_strided_slice %9 {offsets = [0, 8], sizes = [8, 4], strides = [1, 1]} : vector<8x16xf32> to vector<8x4xf32>
    %cst_18 = arith.constant dense<0.000000e+00> : vector<8x8xf32>
    %49 = tpu.matmul %46, %47, %cst_18 {dimension_numbers = #tpu.dot_dimension_numbers<[1], [1], [0], [0], [0, 0, 1, 0], [], []>} : vector<8x4xf32>, vector<8x4xf32>, vector<8x8xf32> -> vector<8x8xf32>
    %cst_19 = arith.constant dense<0xFF800000> : vector<8xf32>
    %50 = vector.multi_reduction <maximumf>, %49, %cst_19 [1] : vector<8x8xf32> to vector<8xf32>
    %51 = vector.shape_cast %50 : vector<8xf32> to vector<8x1xf32>
    %52 = vector.broadcast %51 : vector<8x1xf32> to vector<8x8xf32>
    %53 = arith.subf %49, %52 : vector<8x8xf32>
    %54 = math.exp %53 : vector<8x8xf32>
    %cst_20 = arith.constant dense<0.000000e+00> : vector<8xf32>
    %55 = vector.multi_reduction <add>, %54, %cst_20 [1] : vector<8x8xf32> to vector<8xf32>
    %56 = vector.shape_cast %55 : vector<8xf32> to vector<8x1xf32>
    %cst_21 = arith.constant dense<0.000000e+00> : vector<8x4xf32>
    %57 = tpu.matmul %54, %48, %cst_21 {dimension_numbers = #tpu.dot_dimension_numbers<[1], [0], [0], [1], [0, 0, 1, 1], [], []>} : vector<8x8xf32>, vector<8x4xf32>, vector<8x4xf32> -> vector<8x4xf32>
    %58 = tpu.reciprocal %56 : vector<8x1xf32> -> vector<8x1xf32>
    %59 = vector.broadcast %58 : vector<8x1xf32> to vector<8x4xf32>
    %60 = arith.mulf %57, %59 : vector<8x4xf32>
    %c0_22 = arith.constant 0 : index
    %c2 = arith.constant 2 : index
    %c0_23 = arith.constant 0 : index
    %c0_24 = arith.constant 0 : index
    %61 = vector.load %arg2[%c0_22, %c2, %c0_23, %c0_24] : memref<1x4x8x4xf32, #tpu.memory_space<vmem>>, vector<1x1x8x4xf32>
    %62 = vector.shape_cast %61 : vector<1x1x8x4xf32> to vector<8x4xf32>
    %63 = vector.shape_cast %60 : vector<8x4xf32> to vector<1x1x8x4xf32>
    tpu.vector_store %arg2[%c0_22, %c2, %c0_23, %c0_24], %63 {strides = array<i32>} : memref<1x4x8x4xf32, #tpu.memory_space<vmem>>, vector<1x1x8x4xf32>,
    %64 = vector.extract_strided_slice %5 {offsets = [0, 12], sizes = [8, 4], strides = [1, 1]} : vector<8x16xf32> to vector<8x4xf32>
    %65 = vector.extract_strided_slice %7 {offsets = [0, 12], sizes = [8, 4], strides = [1, 1]} : vector<8x16xf32> to vector<8x4xf32>
    %66 = vector.extract_strided_slice %9 {offsets = [0, 12], sizes = [8, 4], strides = [1, 1]} : vector<8x16xf32> to vector<8x4xf32>
    %cst_25 = arith.constant dense<0.000000e+00> : vector<8x8xf32>
    %67 = tpu.matmul %64, %65, %cst_25 {dimension_numbers = #tpu.dot_dimension_numbers<[1], [1], [0], [0], [0, 0, 1, 0], [], []>} : vector<8x4xf32>, vector<8x4xf32>, vector<8x8xf32> -> vector<8x8xf32>
    %cst_26 = arith.constant dense<0xFF800000> : vector<8xf32>
    %68 = vector.multi_reduction <maximumf>, %67, %cst_26 [1] : vector<8x8xf32> to vector<8xf32>
    %69 = vector.shape_cast %68 : vector<8xf32> to vector<8x1xf32>
    %70 = vector.broadcast %69 : vector<8x1xf32> to vector<8x8xf32>
    %71 = arith.subf %67, %70 : vector<8x8xf32>
    %72 = math.exp %71 : vector<8x8xf32>
    %cst_27 = arith.constant dense<0.000000e+00> : vector<8xf32>
    %73 = vector.multi_reduction <add>, %72, %cst_27 [1] : vector<8x8xf32> to vector<8xf32>
    %74 = vector.shape_cast %73 : vector<8xf32> to vector<8x1xf32>
    %cst_28 = arith.constant dense<0.000000e+00> : vector<8x4xf32>
    %75 = tpu.matmul %72, %66, %cst_28 {dimension_numbers = #tpu.dot_dimension_numbers<[1], [0], [0], [1], [0, 0, 1, 1], [], []>} : vector<8x8xf32>, vector<8x4xf32>, vector<8x4xf32> -> vector<8x4xf32>
    %76 = tpu.reciprocal %74 : vector<8x1xf32> -> vector<8x1xf32>
    %77 = vector.broadcast %76 : vector<8x1xf32> to vector<8x4xf32>
    %78 = arith.mulf %75, %77 : vector<8x4xf32>
    %c0_29 = arith.constant 0 : index
    %c3 = arith.constant 3 : index
    %c0_30 = arith.constant 0 : index
    %c0_31 = arith.constant 0 : index
    %79 = vector.load %arg2[%c0_29, %c3, %c0_30, %c0_31] : memref<1x4x8x4xf32, #tpu.memory_space<vmem>>, vector<1x1x8x4xf32>
    %80 = vector.shape_cast %79 : vector<1x1x8x4xf32> to vector<8x4xf32>
    %81 = vector.shape_cast %78 : vector<8x4xf32> to vector<1x1x8x4xf32>
    tpu.vector_store %arg2[%c0_29, %c3, %c0_30, %c0_31], %81 {strides = array<i32>} : memref<1x4x8x4xf32, #tpu.memory_space<vmem>>, vector<1x1x8x4xf32>,
    return
  }
  func.func @transform_0(%arg0: i32) -> (i32, i32, i32, i32) {
    %c0_i32 = arith.constant 0 : i32
    %c0_i32_0 = arith.constant 0 : i32
    %c0_i32_1 = arith.constant 0 : i32
    %c0_i32_2 = arith.constant 0 : i32
    return %arg0, %c0_i32, %c0_i32_0, %c0_i32_1 : i32, i32, i32, i32
  }
  func.func @transform_1(%arg0: i32) -> (i32, i32, i32, i32) {
    %c0_i32 = arith.constant 0 : i32
    %c0_i32_0 = arith.constant 0 : i32
    %c0_i32_1 = arith.constant 0 : i32
    %c0_i32_2 = arith.constant 0 : i32
    return %arg0, %c0_i32, %c0_i32_0, %c0_i32_1 : i32, i32, i32, i32
  }
}

</mosaic_0001>

<llo_original>
// kernel: attention_forward.3
$region0: #{attention_forward.3}
  #allocation0 [shape = 'u32[]', space=smem, size = 0x4, offset = 0x4, fixed_abs, tag = 'smem constant byte address 0x4 - core index']
  #allocation1 [shape = 'u32[72,128]{1,0:T(1,128)}', space=vmem, size = 0x9000, scoped, tag = 'internal scratch']
  #allocation2 [shape = 'f32[16,16]{1,0:T(8,128)}', space=vmem, size = 0x2000, scoped, tag = 'scratch operand']
  %s0 = inlined_call_operand.vmem [shape: f32[16,16], index: 0, kind: input, shape index: {}]
  %s1 = inlined_call_operand.vmem [shape: f32[16,16], index: 1, kind: input, shape index: {}]
  %s2 = inlined_call_operand.hbm [shape: f32[16,16], index: 2, kind: output, shape index: {}]
  %s3 = sld [smem:[#allocation0]]
  $region26: #{attention_forward.3} parent=0
    _
  %s5 = ssub.s32 1, %s3
  %s6 = scalar_select 0, %s5, %s3
  $region1: #{attention_forward.3} parent=0
    #allocation3 [shape = 'u8[8192]{0}', space=vmem, size = 0x2000, scoped, tag = 'output window, operand 0, single buffered']
    #allocation4 [shape = 's32[1]{0}', space=sflag, size = 0x4, scoped, tag = 'scoped memory for attention_forward.3']
    %7 = vsyncpa [#allocation4], 0
    // Predicated region
    $region2: #{attention_forward.3} parent=1 // pred_check
      _
    $region3: #{attention_forward.3} parent=1 // pred_check_branch
      %9 = sbr.rel (0) target = $region5
    $region4: #{attention_forward.3} parent=1 // pred_region
      _
    $region5: #{attention_forward.3} parent=1 // pred_fallthru
      _
    // Predicated region
    $region6: #{attention_forward.3} parent=1 // pred_check
      _
    $region7: #{attention_forward.3} parent=1 // pred_check_branch
      %11 = sbr.rel (0) target = $region9
    $region8: #{attention_forward.3} parent=1 // pred_region
      _
    $region9: #{attention_forward.3} parent=1 // pred_fallthru
      _
    %p12 = scmp.eq.s32.totalorder 0, 0
    // Predicated region
    $region10: #{attention_forward.3} parent=1 // pred_check
      %p13 = pneg %p12
    $region11: #{attention_forward.3} parent=1 // pred_check_branch
      %15 = sbr.rel (%p13) target = $region13
    $region12: #{attention_forward.3} parent=1 // pred_region
      %vm16 = vcmask 130048
      %17 = vst.msk [vmem:[#allocation2] sm:$0xff] %vm16, 0.0
      %18 = vst.msk [vmem:[#allocation2 + $0x8] sm:$0xff] %vm16, 0.0
    $region13: #{attention_forward.3} parent=1 // pred_fallthru
      _
    %v19 = vld [vmem:[#allocation2] sm:$0xff]
    %v20 = vld [vmem:[#allocation2 + $0x8] sm:$0xff]
    %v21 = vld [vmem:[%s0] sm:$0xff]
    %v22 = vld [vmem:[%s0 + $0x8] sm:$0xff]
    %v23 = vld [vmem:[%s1] sm:$0xff]
    %v24 = vld [vmem:[%s1 + $0x8] sm:$0xff]
    %vm25 = vcmask 130048
    %v27 = vsel %vm25, %v21, 0
    %v30 = vsel %vm25, %v22, 0
    %v33 = vsel %vm25, %v23, 0
    %v36 = vsel %vm25, %v24, 0
    %38 = vmatpush.xpose.msra.mxu0 0.0
    %39 = vmatpush.xpose.msra.mxu0 0.0
    %40 = vmatpush.xpose.msra.mxu0 0.0
    %41 = vmatpush.xpose.msra.mxu0 0.0
    %42 = vmatpush.xpose.msra.mxu0 0.0
    %43 = vmatpush.xpose.msra.mxu0 0.0
    %44 = vmatpush.xpose.msra.mxu0 0.0
    %45 = vmatpush.xpose.msra.mxu0 0.0
    %46 = vmatpush.xpose.msra.mxu0 0.0
    %47 = vmatpush.xpose.msra.mxu0 0.0
    %48 = vmatpush.xpose.msra.mxu0 0.0
    %49 = vmatpush.xpose.msra.mxu0 0.0
    %50 = vmatpush.xpose.msra.mxu0 0.0
    %51 = vmatpush.xpose.msra.mxu0 0.0
    %52 = vmatpush.xpose.msra.mxu0 %v36
    %53 = vmatpush.xpose.msra.mxu0 %v33
    %54 = vmatmul.f32.gmra.mxu0 %v27
    %v55 = vpop.f32.mrf.mxu0
    %v56 = vadd.f32 0.0, %v55
    %57 = vmatmul.f32.gmra.mxu0 %v30
    %v58 = vpop.f32.mrf.mxu0
    %v59 = vadd.f32 0.0, %v58
    %60 = vdwg.mxu0
    %v61 = vadd.f32 %v19, %v56
    %v62 = vadd.f32 %v20, %v59
    %63 = vst.msk [vmem:[#allocation2] sm:$0xff] %vm25, %v61
    %64 = vst.msk [vmem:[#allocation2 + $0x8] sm:$0xff] %vm25, %v62
    // Predicated region
    $region14: #{attention_forward.3} parent=1 // pred_check
      %p65 = pneg %p12
    $region15: #{attention_forward.3} parent=1 // pred_check_branch
      %67 = sbr.rel (%p65) target = $region17
    $region16: #{attention_forward.3} parent=1 // pred_region
      %v68 = vld [vmem:[#allocation2] sm:$0xff]
      %v69 = vld [vmem:[#allocation2 + $0x8] sm:$0xff]
      %70 = vst.msk [vmem:[#allocation3] sm:$0xff] %vm25, %v68
      %71 = vst.msk [vmem:[#allocation3 + $0x8] sm:$0xff] %vm25, %v69
    $region17: #{attention_forward.3} parent=1 // pred_fallthru
      _
    // Predicated region
    $region18: #{attention_forward.3} parent=1 // pred_check
      _
    $region19: #{attention_forward.3} parent=1 // pred_check_branch
      %73 = sbr.rel (0) target = $region21
    $region20: #{attention_forward.3} parent=1 // pred_region
      %75 = vsyncadd [#allocation4], 0
      %s76 = sshll.u32 [#allocation3], 4
      %s77 = int_to_ptr.vmem [resolvable:$true] %s76
      %s78 = sshll.u32 %s2, 4
      %s79 = int_to_ptr.hbm [resolvable:$true] %s78
      %84 = dma.vmem_to_hbm [thread:$0]  %s77, 256, %s79, [#allocation4], 128, 128, 8
    $region21: #{attention_forward.3} parent=1 // pred_fallthru
      _
    // Predicated region
    $region22: #{attention_forward.3} parent=1 // pred_check
      _
    $region23: #{attention_forward.3} parent=1 // pred_check_branch
      %86 = sbr.rel (0) target = $region25
    $region24: #{attention_forward.3} parent=1 // pred_region
      %88 = dma.done [#allocation4], 256
    $region25: #{attention_forward.3} parent=1 // pred_fallthru
      _
    %89 = vsyncpa [#allocation4], 1

// kernel: attention_forward.2
$region0: #{attention_forward.2}
  #allocation0 [shape = 'u32[]', space=smem, size = 0x4, offset = 0x4, fixed_abs, tag = 'smem constant byte address 0x4 - core index']
  #allocation1 [shape = 'u32[72,128]{1,0:T(1,128)}', space=vmem, size = 0x9000, scoped, tag = 'internal scratch']
  %s0 = inlined_call_operand.vmem [shape: f32[2,8,3,16], index: 0, kind: input, shape index: {}]
  %s1 = inlined_call_operand.vmem [shape: f32[2,4,8,4], index: 1, kind: output, shape index: {}]
  %s2 = sld [smem:[#allocation0]]
  $region37: #{attention_forward.2} parent=0
    _
  %s4 = ssub.s32 1, %s2
  %s5 = scalar_select 0, %s4, %s2
  loop: start=0, step=1, limit=4
  $region2: #{attention_forward.2} parent=0 // loop_pre_header
    _
  $region3: #{attention_forward.2} parent=0 // loop_header
    %s7 = sphi 0, %s11
    %p8 = scmp.ge.s32.totalorder %s7, 4
    %s17 = sphi 0, %s19
    %s20 = sphi 0, %s17
    %s21 = sphi 0, %s20
    %s37 = sphi 0, %s21
    %s43 = sphi 0, %s45
    %s46 = sphi 0, %s43
    %s47 = sphi 0, %s46
    %s63 = sphi 0, %s47
  $region4: #{attention_forward.2} parent=0 // loop_header_branch
    %10 = sbr.rel (%p8) target = $region8
  $region5: #{attention_forward.2} parent=0 // loop_body
    %s12 = ssub.s32 %s7, 1
    %s13 = ssub.s32 %s7, 2
    %s14 = sadd.s32 %s7, 1
    %s15 = ssub.s32 %s7, %s14
    %p16 = scmp.eq.s32.totalorder %s15, 0
    %s18 = sadd.s32 %s17, 1
    %s19 = scalar_select %p16, %s17, %s18
    %p22 = pneg %p16
    %p23 = scmp.eq.s32.totalorder %s7, 1
    %p24 = por %p22, %p23
    %p25 = scmp.ne.s32.totalorder %s17, %s20
    %p26 = scmp.eq.s32.totalorder %s7, 0
    %p27 = por %p25, %p26
    %p28 = scmp.ne.s32.totalorder %s17, %s20
    %p29 = scmp.eq.s32.totalorder %s12, 1
    %p30 = por %p28, %p29
    %p31 = scmp.ne.s32.totalorder %s20, %s21
    %p32 = scmp.eq.s32.totalorder %s12, 0
    %p33 = por %p31, %p32
    %p34 = scmp.ne.s32.totalorder %s20, %s21
    %p35 = scmp.eq.s32.totalorder %s13, 1
    %p36 = por %p34, %p35
    %p38 = scmp.ne.s32.totalorder %s21, %s37
    %p39 = scmp.eq.s32.totalorder %s13, 0
    %p40 = por %p38, %p39
    %s41 = ssub.s32 %s7, %s14
    %p42 = scmp.eq.s32.totalorder %s41, 0
    %s44 = sadd.s32 %s43, 1
    %s45 = scalar_select %p42, %s43, %s44
    %p48 = pneg %p42
    %p49 = scmp.eq.s32.totalorder %s7, 1
    %p50 = por %p48, %p49
    %p51 = scmp.ne.s32.totalorder %s43, %s46
    %p52 = scmp.eq.s32.totalorder %s7, 0
    %p53 = por %p51, %p52
    %p54 = scmp.ne.s32.totalorder %s43, %s46
    %p55 = scmp.eq.s32.totalorder %s12, 1
    %p56 = por %p54, %p55
    %p57 = scmp.ne.s32.totalorder %s46, %s47
    %p58 = scmp.eq.s32.totalorder %s12, 0
    %p59 = por %p57, %p58
    %p60 = scmp.ne.s32.totalorder %s46, %s47
    %p61 = scmp.eq.s32.totalorder %s13, 1
    %p62 = por %p60, %p61
    %p64 = scmp.ne.s32.totalorder %s47, %s63
    %p65 = scmp.eq.s32.totalorder %s13, 0
    %p66 = por %p64, %p65
    %p67 = scmp.le.s32.totalorder 1, %s7
    %p68 = scmp.lt.s32.totalorder %s7, 3
    %p69 = pnand %p67, %p68
    %p70 = pneg %p69
    // Predicated region
    $region9: #{attention_forward.2} parent=5 // pred_check
      _
    $region10: #{attention_forward.2} parent=5 // pred_check_branch
      %72 = sbr.rel (%p69) target = $region12
    $region11: #{attention_forward.2} parent=5 // pred_region
      %s73 = ssub.s32 %s7, 1
    $region12: #{attention_forward.2} parent=5 // pred_fallthru
      _
    %p74 = scmp.lt.s32.totalorder %s7, 2
    // Predicated region
    $region13: #{attention_forward.2} parent=5 // pred_check
      %p75 = pneg %p74
    $region14: #{attention_forward.2} parent=5 // pred_check_branch
      %77 = sbr.rel (%p75) target = $region16
    $region15: #{attention_forward.2} parent=5 // pred_region
      // Predicated region
      $region17: #{attention_forward.2} parent=15 // pred_check
        %p78 = pneg %p27
      $region18: #{attention_forward.2} parent=15 // pred_check_branch
        %80 = sbr.rel (%p78) target = $region20
      $region19: #{attention_forward.2} parent=15 // pred_region
        %p81 = scmp.lt.s32.totalorder %s7, 1
        %s82 = scalar_select %p81, %s7, 1
        %s83 = smul.addr %s82, 8
        %s84 = smul.addr %s83, 4
        %s85 = scalar_lea.vmem %s0, %s84
      $region20: #{attention_forward.2} parent=15 // pred_fallthru
        _
    $region16: #{attention_forward.2} parent=5 // pred_fallthru
      _
    %p86 = scmp.le.s32.totalorder 1, %s7
    %p87 = scmp.lt.s32.totalorder %s7, 3
    %p88 = pnand %p86, %p87
    %p89 = pneg %p88
    // Predicated region
    $region21: #{attention_forward.2} parent=5 // pred_check
      _
    $region22: #{attention_forward.2} parent=5 // pred_check_branch
      %91 = sbr.rel (%p88) target = $region24
    $region23: #{attention_forward.2} parent=5 // pred_region
      %s92 = ssub.s32 %s7, 1
      %p93 = scmp.lt.s32.totalorder %s12, 1
      %s94 = scalar_select %p93, %s12, 1
      %s95 = smul.addr %s94, 8
      %s96 = smul.addr %s95, 4
      %s97 = scalar_lea.vmem %s0, %s96
      %p98 = pneg %p33
      %p99 = pneg %p30
      %p100 = pneg %p59
      %p101 = pneg %p56
      %p102 = scmp.lt.s32.totalorder %s12, 1
      %s103 = scalar_select %p102, %s12, 1
      %s104 = smul.addr %s103, 4
      %s105 = smul.addr %s104, 8
      %s106 = scalar_lea.vmem %s1, %s105
      %p107 = scmp.lt.s32.totalorder %s12, 1
      %s108 = scalar_select %p107, %s12, 1
      %s109 = smul.addr %s108, 8
      %s110 = smul.addr %s109, 4
      %s111 = scalar_lea.vmem %s0, %s110
      %p112 = scmp.lt.s32.totalorder %s12, 1
      %s113 = scalar_select %p112, %s12, 1
      %s114 = smul.addr %s113, 4
      %s115 = smul.addr %s114, 8
      %s116 = scalar_lea.vmem %s1, %s115
      %v117 = vld [vmem:[%s111] sm:$0x7]
      %v118 = vld [vmem:[%s111 + $0x4] sm:$0x7]
      %v119 = vld [vmem:[%s111 + $0x8] sm:$0x7]
      %v120 = vld [vmem:[%s111 + $0xc] sm:$0x7]
      %v121 = vld [vmem:[%s111 + $0x10] sm:$0x7]
      %v122 = vld [vmem:[%s111 + $0x14] sm:$0x7]
      %v123 = vld [vmem:[%s111 + $0x18] sm:$0x7]
      %v124 = vld [vmem:[%s111 + $0x1c] sm:$0x7]
      %v125 = vmul.f32 %v117, 0.5
      %v126 = vmul.f32 %v118, 0.5
      %v127 = vmul.f32 %v119, 0.5
      %v128 = vmul.f32 %v120, 0.5
      %v129 = vmul.f32 %v121, 0.5
      %v130 = vmul.f32 %v122, 0.5
      %v131 = vmul.f32 %v123, 0.5
      %v132 = vmul.f32 %v124, 0.5
      %v141 = vrot.slane %v126, 7
      %vm142 = vcmask 1041409
      %v143 = vsel %vm142, %v141, %v125
      %v144 = vrot.slane %v127, 6
      %vm145 = vcmask 1042434
      %v146 = vsel %vm145, %v144, %v143
      %v147 = vrot.slane %v128, 5
      %vm148 = vcmask 1043459
      %v149 = vsel %vm148, %v147, %v146
      %v150 = vrot.slane %v129, 4
      %vm151 = vcmask 1044484
      %v152 = vsel %vm151, %v150, %v149
      %v153 = vrot.slane %v130, 3
      %vm154 = vcmask 1045509
      %v155 = vsel %vm154, %v153, %v152
      %v156 = vrot.slane %v131, 2
      %vm157 = vcmask 1046534
      %v158 = vsel %vm157, %v156, %v155
      %v159 = vrot.slane %v132, 1
      %vm160 = vcmask 1047559
      %v161 = vsel %vm160, %v159, %v158
      %v170 = vrot.slane %v117, 1
      %v171 = vsel %vm142, %v118, %v170
      %v172 = vrot.slane %v119, 7
      %v173 = vsel %vm145, %v172, %v171
      %v174 = vrot.slane %v120, 6
      %v175 = vsel %vm148, %v174, %v173
      %v176 = vrot.slane %v121, 5
      %v177 = vsel %vm151, %v176, %v175
      %v178 = vrot.slane %v122, 4
      %v179 = vsel %vm154, %v178, %v177
      %v180 = vrot.slane %v123, 3
      %v181 = vsel %vm157, %v180, %v179
      %v182 = vrot.slane %v124, 2
      %v183 = vsel %vm160, %v182, %v181
      %vm184 = vcmask 31744
      %v185 = vsel %vm184, %v161, 0
      %v187 = vsel %vm184, %v183, 0
      %189 = vmatpush.xpose.msra.mxu0 0.0
      %190 = vmatpush.xpose.msra.mxu0 0.0
      %191 = vmatpush.xpose.msra.mxu0 0.0
      %192 = vmatpush.xpose.msra.mxu0 0.0
      %193 = vmatpush.xpose.msra.mxu0 0.0
      %194 = vmatpush.xpose.msra.mxu0 0.0
      %195 = vmatpush.xpose.msra.mxu0 0.0
      %196 = vmatpush.xpose.msra.mxu0 0.0
      %197 = vmatpush.xpose.msra.mxu0 0.0
      %198 = vmatpush.xpose.msra.mxu0 0.0
      %199 = vmatpush.xpose.msra.mxu0 0.0
      %200 = vmatpush.xpose.msra.mxu0 0.0
      %201 = vmatpush.xpose.msra.mxu0 0.0
      %202 = vmatpush.xpose.msra.mxu0 0.0
      %203 = vmatpush.xpose.msra.mxu0 0.0
      %204 = vmatpush.xpose.msra.mxu0 %v187
      %205 = vmatmul.f32.gmra.mxu0 %v185
      %v206 = vpop.f32.mrf.mxu0
      %v207 = vadd.f32 0.0, %v206
      %208 = vdwg.mxu0
      %vm209 = vcmask 64512
      %v210 = vsel %vm209, %v207, -inf
      %211 = vmax.xlane.f32.xlu0 %v210
      %v212 = vpop.xlane.xlu0 %211
      %v213 = vsub.f32 %v207, %v212
      %v214 = vmul.f32 %v213, 1.442695
      %v215 = vpow.pop %v214
      %v216 = vsel %vm209, %v215, 0.0
      %217 = vadd.xlane.f32.xlu0 %v216
      %v218 = vpop.xlane.xlu0 %217
      %v219 = vrot.slane %v117, 2
      %v220 = vrot.slane %v118, 1
      %v221 = vsel %vm142, %v220, %v219
      %v222 = vsel %vm145, %v119, %v221
      %v223 = vrot.slane %v120, 7
      %v224 = vsel %vm148, %v223, %v222
      %v225 = vrot.slane %v121, 6
      %v226 = vsel %vm151, %v225, %v224
      %v227 = vrot.slane %v122, 5
      %v228 = vsel %vm154, %v227, %v226
      %v229 = vrot.slane %v123, 4
      %v230 = vsel %vm157, %v229, %v228
      %v231 = vrot.slane %v124, 3
      %v232 = vsel %vm160, %v231, %v230
      %v235 = vsel %vm209, %v215, 0
      %237 = vmatpush.msra.mxu0 0.0
      %238 = vmatpush.msra.mxu0 0.0
      %239 = vmatpush.msra.mxu0 0.0
      %240 = vmatpush.msra.mxu0 0.0
      %241 = vmatpush.msra.mxu0 0.0
      %242 = vmatpush.msra.mxu0 0.0
      %243 = vmatpush.msra.mxu0 0.0
      %244 = vmatpush.msra.mxu0 0.0
      %245 = vmatpush.msra.mxu0 0.0
      %246 = vmatpush.msra.mxu0 0.0
      %247 = vmatpush.msra.mxu0 0.0
      %248 = vmatpush.msra.mxu0 0.0
      %249 = vmatpush.msra.mxu0 0.0
      %250 = vmatpush.msra.mxu0 0.0
      %251 = vmatpush.msra.mxu0 0.0
      %252 = vmatpush.msra.mxu0 %v232
      %253 = vmatmul.f32.gmra.mxu0 %v235
      %v254 = vpop.f32.mrf.mxu0
      %v255 = vadd.f32 0.0, %v254
      %256 = vdwg.mxu0
      %v257 = vrcp.pop %v218
      %v258 = vmul.f32 %v218, %v257
      %v259 = vsub.f32 1.0, %v258
      %v260 = vmul.f32 %v257, %v259
      %v261 = vadd.f32 %v257, %v260
      %vm262 = vweird.f32 %v218
      %vm263 = vweird.f32 %v257
      %vm264 = vmor %vm262, %vm263
      %v265 = vsel %vm264, %v257, %v261
      %v266 = vand.u32 2147483647, %v218
      %vm267 = vcmp.eq.f32.partialorder %v266, 8.507059e+37
      %v268 = vand.u32 %v218, 2147483648
      %v269 = vor.u32 1.1754944e-38, %v268
      %v270 = vsel %vm267, %v269, %v265
      %v271 = vmul.f32 %v255, %v270
      %272 = vst.msk [vmem:[%s116] sm:$0xff] %vm184, %v271
      %273 = vrot.lane.b32.xlu0 %v161, 124
      %v274 = vpop.permute.xlu0 %273
      %275 = vrot.lane.b32.xlu0 %v183, 124
      %v276 = vpop.permute.xlu0 %275
      %v277 = vsel %vm184, %v274, 0
      %v279 = vsel %vm184, %v276, 0
      %281 = vmatpush.xpose.msra.mxu0 0.0
      %282 = vmatpush.xpose.msra.mxu0 0.0
      %283 = vmatpush.xpose.msra.mxu0 0.0
      %284 = vmatpush.xpose.msra.mxu0 0.0
      %285 = vmatpush.xpose.msra.mxu0 0.0
      %286 = vmatpush.xpose.msra.mxu0 0.0
      %287 = vmatpush.xpose.msra.mxu0 0.0
      %288 = vmatpush.xpose.msra.mxu0 0.0
      %289 = vmatpush.xpose.msra.mxu0 0.0
      %290 = vmatpush.xpose.msra.mxu0 0.0
      %291 = vmatpush.xpose.msra.mxu0 0.0
      %292 = vmatpush.xpose.msra.mxu0 0.0
      %293 = vmatpush.xpose.msra.mxu0 0.0
      %294 = vmatpush.xpose.msra.mxu0 0.0
      %295 = vmatpush.xpose.msra.mxu0 0.0
      %296 = vmatpush.xpose.msra.mxu0 %v279
      %297 = vmatmul.f32.gmra.mxu0 %v277
      %v298 = vpop.f32.mrf.mxu0
      %v299 = vadd.f32 0.0, %v298
      %300 = vdwg.mxu0
      %v301 = vsel %vm209, %v299, -inf
      %302 = vmax.xlane.f32.xlu0 %v301
      %v303 = vpop.xlane.xlu0 %302
      %v304 = vsub.f32 %v299, %v303
      %v305 = vmul.f32 %v304, 1.442695
      %v306 = vpow.pop %v305
      %v307 = vsel %vm209, %v306, 0.0
      %308 = vadd.xlane.f32.xlu0 %v307
      %v309 = vpop.xlane.xlu0 %308
      %310 = vrot.lane.b32.xlu0 %v232, 124
      %v311 = vpop.permute.xlu0 %310
      %v314 = vsel %vm209, %v306, 0
      %316 = vmatpush.msra.mxu0 0.0
      %317 = vmatpush.msra.mxu0 0.0
      %318 = vmatpush.msra.mxu0 0.0
      %319 = vmatpush.msra.mxu0 0.0
      %320 = vmatpush.msra.mxu0 0.0
      %321 = vmatpush.msra.mxu0 0.0
      %322 = vmatpush.msra.mxu0 0.0
      %323 = vmatpush.msra.mxu0 0.0
      %324 = vmatpush.msra.mxu0 0.0
      %325 = vmatpush.msra.mxu0 0.0
      %326 = vmatpush.msra.mxu0 0.0
      %327 = vmatpush.msra.mxu0 0.0
      %328 = vmatpush.msra.mxu0 0.0
      %329 = vmatpush.msra.mxu0 0.0
      %330 = vmatpush.msra.mxu0 0.0
      %331 = vmatpush.msra.mxu0 %v311
      %332 = vmatmul.f32.gmra.mxu0 %v314
      %v333 = vpop.f32.mrf.mxu0
      %v334 = vadd.f32 0.0, %v333
      %335 = vdwg.mxu0
      %v336 = vrcp.pop %v309
      %v337 = vmul.f32 %v309, %v336
      %v338 = vsub.f32 1.0, %v337
      %v339 = vmul.f32 %v336, %v338
      %v340 = vadd.f32 %v336, %v339
      %vm341 = vweird.f32 %v309
      %vm342 = vweird.f32 %v336
      %vm343 = vmor %vm341, %vm342
      %v344 = vsel %vm343, %v336, %v340
      %v345 = vand.u32 2147483647, %v309
      %vm346 = vcmp.eq.f32.partialorder %v345, 8.507059e+37
      %v347 = vand.u32 %v309, 2147483648
      %v348 = vor.u32 1.1754944e-38, %v347
      %v349 = vsel %vm346, %v348, %v344
      %v350 = vmul.f32 %v334, %v349
      %s351 = scalar_lea.vmem %s116, 8
      %352 = vst.msk [vmem:[%s351] sm:$0xff] %vm184, %v350
      %353 = vrot.lane.b32.xlu0 %v161, 120
      %v354 = vpop.permute.xlu0 %353
      %355 = vrot.lane.b32.xlu0 %v183, 120
      %v356 = vpop.permute.xlu0 %355
      %v357 = vsel %vm184, %v354, 0
      %v359 = vsel %vm184, %v356, 0
      %361 = vmatpush.xpose.msra.mxu0 0.0
      %362 = vmatpush.xpose.msra.mxu0 0.0
      %363 = vmatpush.xpose.msra.mxu0 0.0
      %364 = vmatpush.xpose.msra.mxu0 0.0
      %365 = vmatpush.xpose.msra.mxu0 0.0
      %366 = vmatpush.xpose.msra.mxu0 0.0
      %367 = vmatpush.xpose.msra.mxu0 0.0
      %368 = vmatpush.xpose.msra.mxu0 0.0
      %369 = vmatpush.xpose.msra.mxu0 0.0
      %370 = vmatpush.xpose.msra.mxu0 0.0
      %371 = vmatpush.xpose.msra.mxu0 0.0
      %372 = vmatpush.xpose.msra.mxu0 0.0
      %373 = vmatpush.xpose.msra.mxu0 0.0
      %374 = vmatpush.xpose.msra.mxu0 0.0
      %375 = vmatpush.xpose.msra.mxu0 0.0
      %376 = vmatpush.xpose.msra.mxu0 %v359
      %377 = vmatmul.f32.gmra.mxu0 %v357
      %v378 = vpop.f32.mrf.mxu0
      %v379 = vadd.f32 0.0, %v378
      %380 = vdwg.mxu0
      %v381 = vsel %vm209, %v379, -inf
      %382 = vmax.xlane.f32.xlu0 %v381
      %v383 = vpop.xlane.xlu0 %382
      %v384 = vsub.f32 %v379, %v383
      %v385 = vmul.f32 %v384, 1.442695
      %v386 = vpow.pop %v385
      %v387 = vsel %vm209, %v386, 0.0
      %388 = vadd.xlane.f32.xlu0 %v387
      %v389 = vpop.xlane.xlu0 %388
      %390 = vrot.lane.b32.xlu0 %v232, 120
      %v391 = vpop.permute.xlu0 %390
      %v394 = vsel %vm209, %v386, 0
      %396 = vmatpush.msra.mxu0 0.0
      %397 = vmatpush.msra.mxu0 0.0
      %398 = vmatpush.msra.mxu0 0.0
      %399 = vmatpush.msra.mxu0 0.0
      %400 = vmatpush.msra.mxu0 0.0
      %401 = vmatpush.msra.mxu0 0.0
      %402 = vmatpush.msra.mxu0 0.0
      %403 = vmatpush.msra.mxu0 0.0
      %404 = vmatpush.msra.mxu0 0.0
      %405 = vmatpush.msra.mxu0 0.0
      %406 = vmatpush.msra.mxu0 0.0
      %407 = vmatpush.msra.mxu0 0.0
      %408 = vmatpush.msra.mxu0 0.0
      %409 = vmatpush.msra.mxu0 0.0
      %410 = vmatpush.msra.mxu0 0.0
      %411 = vmatpush.msra.mxu0 %v391
      %412 = vmatmul.f32.gmra.mxu0 %v394
      %v413 = vpop.f32.mrf.mxu0
      %v414 = vadd.f32 0.0, %v413
      %415 = vdwg.mxu0
      %v416 = vrcp.pop %v389
      %v417 = vmul.f32 %v389, %v416
      %v418 = vsub.f32 1.0, %v417
      %v419 = vmul.f32 %v416, %v418
      %v420 = vadd.f32 %v416, %v419
      %vm421 = vweird.f32 %v389
      %vm422 = vweird.f32 %v416
      %vm423 = vmor %vm421, %vm422
      %v424 = vsel %vm423, %v416, %v420
      %v425 = vand.u32 2147483647, %v389
      %vm426 = vcmp.eq.f32.partialorder %v425, 8.507059e+37
      %v427 = vand.u32 %v389, 2147483648
      %v428 = vor.u32 1.1754944e-38, %v427
      %v429 = vsel %vm426, %v428, %v424
      %v430 = vmul.f32 %v414, %v429
      %s431 = scalar_lea.vmem %s116, 16
      %432 = vst.msk [vmem:[%s431] sm:$0xff] %vm184, %v430
      %433 = vrot.lane.b32.xlu0 %v161, 116
      %v434 = vpop.permute.xlu0 %433
      %435 = vrot.lane.b32.xlu0 %v183, 116
      %v436 = vpop.permute.xlu0 %435
      %v437 = vsel %vm184, %v434, 0
      %v439 = vsel %vm184, %v436, 0
      %441 = vmatpush.xpose.msra.mxu0 0.0
      %442 = vmatpush.xpose.msra.mxu0 0.0
      %443 = vmatpush.xpose.msra.mxu0 0.0
      %444 = vmatpush.xpose.msra.mxu0 0.0
      %445 = vmatpush.xpose.msra.mxu0 0.0
      %446 = vmatpush.xpose.msra.mxu0 0.0
      %447 = vmatpush.xpose.msra.mxu0 0.0
      %448 = vmatpush.xpose.msra.mxu0 0.0
      %449 = vmatpush.xpose.msra.mxu0 0.0
      %450 = vmatpush.xpose.msra.mxu0 0.0
      %451 = vmatpush.xpose.msra.mxu0 0.0
      %452 = vmatpush.xpose.msra.mxu0 0.0
      %453 = vmatpush.xpose.msra.mxu0 0.0
      %454 = vmatpush.xpose.msra.mxu0 0.0
      %455 = vmatpush.xpose.msra.mxu0 0.0
      %456 = vmatpush.xpose.msra.mxu0 %v439
      %457 = vmatmul.f32.gmra.mxu0 %v437
      %v458 = vpop.f32.mrf.mxu0
      %v459 = vadd.f32 0.0, %v458
      %460 = vdwg.mxu0
      %v461 = vsel %vm209, %v459, -inf
      %462 = vmax.xlane.f32.xlu0 %v461
      %v463 = vpop.xlane.xlu0 %462
      %v464 = vsub.f32 %v459, %v463
      %v465 = vmul.f32 %v464, 1.442695
      %v466 = vpow.pop %v465
      %v467 = vsel %vm209, %v466, 0.0
      %468 = vadd.xlane.f32.xlu0 %v467
      %v469 = vpop.xlane.xlu0 %468
      %470 = vrot.lane.b32.xlu0 %v232, 116
      %v471 = vpop.permute.xlu0 %470
      %v474 = vsel %vm209, %v466, 0
      %476 = vmatpush.msra.mxu0 0.0
      %477 = vmatpush.msra.mxu0 0.0
      %478 = vmatpush.msra.mxu0 0.0
      %479 = vmatpush.msra.mxu0 0.0
      %480 = vmatpush.msra.mxu0 0.0
      %481 = vmatpush.msra.mxu0 0.0
      %482 = vmatpush.msra.mxu0 0.0
      %483 = vmatpush.msra.mxu0 0.0
      %484 = vmatpush.msra.mxu0 0.0
      %485 = vmatpush.msra.mxu0 0.0
      %486 = vmatpush.msra.mxu0 0.0
      %487 = vmatpush.msra.mxu0 0.0
      %488 = vmatpush.msra.mxu0 0.0
      %489 = vmatpush.msra.mxu0 0.0
      %490 = vmatpush.msra.mxu0 0.0
      %491 = vmatpush.msra.mxu0 %v471
      %492 = vmatmul.f32.gmra.mxu0 %v474
      %v493 = vpop.f32.mrf.mxu0
      %v494 = vadd.f32 0.0, %v493
      %495 = vdwg.mxu0
      %v496 = vrcp.pop %v469
      %v497 = vmul.f32 %v469, %v496
      %v498 = vsub.f32 1.0, %v497
      %v499 = vmul.f32 %v496, %v498
      %v500 = vadd.f32 %v496, %v499
      %vm501 = vweird.f32 %v469
      %vm502 = vweird.f32 %v496
      %vm503 = vmor %vm501, %vm502
      %v504 = vsel %vm503, %v496, %v500
      %v505 = vand.u32 2147483647, %v469
      %vm506 = vcmp.eq.f32.partialorder %v505, 8.507059e+37
      %v507 = vand.u32 %v469, 2147483648
      %v508 = vor.u32 1.1754944e-38, %v507
      %v509 = vsel %vm506, %v508, %v504
      %v510 = vmul.f32 %v494, %v509
      %s511 = scalar_lea.vmem %s116, 24
      %512 = vst.msk [vmem:[%s511] sm:$0xff] %vm184, %v510
      %p513 = scmp.lt.s32.totalorder %s12, 1
      %s514 = scalar_select %p513, %s12, 1
      %s515 = smul.addr %s514, 4
      %s516 = smul.addr %s515, 8
      %s517 = scalar_lea.vmem %s1, %s516
      // Predicated region
      $region25: #{attention_forward.2} parent=23 // pred_check
        %p518 = pneg %p56
      $region26: #{attention_forward.2} parent=23 // pred_check_branch
        %520 = sbr.rel (%p518) target = $region28
      $region27: #{attention_forward.2} parent=23 // pred_region
        _
      $region28: #{attention_forward.2} parent=23 // pred_fallthru
        _
    $region24: #{attention_forward.2} parent=5 // pred_fallthru
      _
    %p521 = scmp.le.s32.totalorder 2, %s7
    // Predicated region
    $region29: #{attention_forward.2} parent=5 // pred_check
      %p522 = pneg %p521
    $region30: #{attention_forward.2} parent=5 // pred_check_branch
      %524 = sbr.rel (%p522) target = $region32
    $region31: #{attention_forward.2} parent=5 // pred_region
      %s525 = ssub.s32 %s7, 2
      // Predicated region
      $region33: #{attention_forward.2} parent=31 // pred_check
        %p526 = pneg %p62
      $region34: #{attention_forward.2} parent=31 // pred_check_branch
        %528 = sbr.rel (%p526) target = $region36
      $region35: #{attention_forward.2} parent=31 // pred_region
        %p529 = scmp.lt.s32.totalorder %s13, 1
        %s530 = scalar_select %p529, %s13, 1
        %s531 = smul.addr %s530, 4
        %s532 = smul.addr %s531, 8
        %s533 = scalar_lea.vmem %s1, %s532
      $region36: #{attention_forward.2} parent=31 // pred_fallthru
        _
    $region32: #{attention_forward.2} parent=5 // pred_fallthru
      _
  $region6: #{attention_forward.2} parent=0 // loop_footer
    %s11 = sadd.s32 1, %s7
  $region7: #{attention_forward.2} parent=0 // loop_footer_branch
    %6 = sbr.rel target = $region3
  $region8: #{attention_forward.2} parent=0 // loop_exit
    _

</llo_original>
